<compile_context>
chip_gen: v6e
topology: v6e:2x2x1
jax: 0.10.0
libtpu: 0.0.40
codegen_flags: <defaults>
</compile_context>

<pallas_src>
import jax
import jax.numpy as jnp
from jax.experimental import pallas as pl
from jax.experimental.pallas import tpu as pltpu

LANE = 128


def _round_up(n, m):
    return ((n + m - 1) // m) * m


def _pick_block_b(B, preferred):
    # Rows per tile: multiple of 16 (bf16 packs 16 rows per sublane group),
    # capped so large batches give the grid >=2 steps (v7x megacore sharding).
    half = _round_up(pl.cdiv(B, 2), 16)
    return max(16, min(preferred, half))


def classify_kernel(x_ref, w1_ref, b1_ref, w2_ref, b2_ref, o_ref):
    # x arrives f32 (native dtype, no host pre-pass); cast to bf16 for the MXU.
    x = x_ref[...].astype(jnp.bfloat16)
    # fc1: (TB, D)bf16 @ (D, 128)bf16 -> f32 accumulate on the MXU.
    h = jnp.dot(x, w1_ref[...], preferred_element_type=jnp.float32)
    h = jnp.maximum(h + b1_ref[...], 0.0)                       # bias + ReLU in f32
    # fc2: (TB, 128)bf16 @ (128, 128)bf16 -> f32 accumulate.
    logits = jnp.dot(h.astype(jnp.bfloat16), w2_ref[...],
                     preferred_element_type=jnp.float32)
    logits = logits + b2_ref[...]           # pad-class bias -1e30 (f32) -> exp == 0
    # Numerically-stable softmax over the lane-dense (padded) class axis, f32.
    m = jnp.max(logits, axis=-1, keepdims=True)
    e = jnp.exp(logits - m)
    s = jnp.sum(e, axis=-1, keepdims=True)
    # approx=True -> EUP vrcp slot; ~2^-12 rel. error, invisible vs bf16 output.
    o_ref[...] = (e * pl.reciprocal(s, approx=True)).astype(o_ref.dtype)


def prepare_params(w1_t, b1, w2_t, b2):
    """One-time lane-dense padding / bf16 cast of the weights (do NOT call per-forward).

    w1_t: (D, hidden) pre-transposed, w2_t: (hidden, out) pre-transposed.
    """
    D, hidden = w1_t.shape
    out_size = w2_t.shape[1]
    HP = _round_up(hidden, LANE)            # 80  -> 128
    OP = _round_up(out_size, LANE)          # 10  -> 128

    w1p = jnp.zeros((D, HP), jnp.bfloat16).at[:, :hidden].set(
        w1_t.astype(jnp.bfloat16))
    b1p = jnp.zeros((1, HP), jnp.float32).at[0, :hidden].set(
        b1.astype(jnp.float32))
    w2p = jnp.zeros((HP, OP), jnp.bfloat16).at[:hidden, :out_size].set(
        w2_t.astype(jnp.bfloat16))
    # Pad classes get a huge negative bias (kept in f32!) so softmax -> exactly 0.
    b2p = jnp.full((1, OP), -1e30, jnp.float32).at[0, :out_size].set(
        b2.astype(jnp.float32))
    return (w1p, b1p, w2p, b2p, out_size)


def classify_forward(x, params, *, block_b=1024, return_padded=False):
    """x: (B, S, C, H, W) (any float dtype). params: output of prepare_params().

    Returns softmax probabilities (B, out) f32, or the padded (B, 128) bf16
    result (pad classes exactly 0) when return_padded=True.
    """
    w1p, b1p, w2p, b2p, out_size = params
    B = x.shape[0]
    D, HP = w1p.shape
    OP = w2p.shape[1]

    # torch: tensor(x, dtype=float32).view(B, -1)  -- reshape is metadata-only.
    if x.dtype != jnp.float32:
        x = x.astype(jnp.float32)
    x2d = x.reshape(B, -1)
    assert x2d.shape[1] == D

    bb = _pick_block_b(B, block_b)
    grid = (pl.cdiv(B, bb),)

    cost = pl.CostEstimate(
        flops=2 * B * (D * HP + HP * OP),
        transcendentals=B * OP,
        bytes_accessed=4 * B * D                       # x read (f32, once)
        + 2 * (D * HP + HP * OP) + 4 * (HP + OP)       # weights + biases
        + 2 * B * OP,                                  # bf16 output writeback
    )

    out = pl.pallas_call(
        classify_kernel,
        out_shape=jax.ShapeDtypeStruct((B, OP), jnp.bfloat16),
        grid=grid,
        in_specs=[
            pl.BlockSpec((bb, D), lambda i: (i, 0)),    # x tile: pipelined DMA
            pl.BlockSpec((D, HP), lambda i: (0, 0)),    # weights VMEM-resident
            pl.BlockSpec((1, HP), lambda i: (0, 0)),
            pl.BlockSpec((HP, OP), lambda i: (0, 0)),
            pl.BlockSpec((1, OP), lambda i: (0, 0)),
        ],
        out_specs=pl.BlockSpec((bb, OP), lambda i: (i, 0)),
        compiler_params=pltpu.CompilerParams(
            dimension_semantics=("parallel",),          # megacore on v7x
        ),
        cost_estimate=cost,
    )(x2d, w1p, b1p, w2p, b2p)

    if return_padded:
        # (B, 128) bf16; columns >= out_size are exactly zero probability.
        return out
    # Module semantics: (B, out) f32 probabilities (tiny slice; skip via
    # return_padded=True if the consumer tolerates the padded layout).
    return out[:, :out_size].astype(jnp.float32)


def init_params(key, input_size, hidden_size=80, output_size=10):
    """Deterministic init mimicking nn.Linear defaults (uniform +/- 1/sqrt(fan_in))."""
    k1, k2, k3, k4 = jax.random.split(key, 4)
    lim1 = 1.0 / jnp.sqrt(jnp.float32(input_size))
    lim2 = 1.0 / jnp.sqrt(jnp.float32(hidden_size))
    # Stored already transposed: (in, out) so the kernel does x @ W.
    w1_t = jax.random.uniform(k1, (input_size, hidden_size), jnp.float32, -lim1, lim1)
    b1 = jax.random.uniform(k2, (hidden_size,), jnp.float32, -lim1, lim1)
    w2_t = jax.random.uniform(k3, (hidden_size, output_size), jnp.float32, -lim2, lim2)
    b2 = jax.random.uniform(k4, (output_size,), jnp.float32, -lim2, lim2)
    return w1_t, b1, w2_t, b2


def reference_forward(x, w1_t, b1, w2_t, b2):
    """Pure f32 JAX reference mirroring the PyTorch module."""
    x2d = x.astype(jnp.float32).reshape(x.shape[0], -1)
    h = jnp.maximum(x2d @ w1_t + b1, 0.0)
    logits = h @ w2_t + b2
    return jax.nn.softmax(logits, axis=1)


if __name__ == "__main__":
    # Small shapes consistent with the module: (B, S, C, H, W)
    B, S, C, H, W = 2, 2, 3, 8, 8
    input_size = S * C * H * W            # 384
    hidden_size, output_size = 80, 10

    key = jax.random.PRNGKey(0)
    kx, kp = jax.random.split(key)
    x = jax.random.normal(kx, (B, S, C, H, W), jnp.float32)
    w1_t, b1, w2_t, b2 = init_params(kp, input_size, hidden_size, output_size)

    params = prepare_params(w1_t, b1, w2_t, b2)   # one-time pad/cast, off hot path
    out = classify_forward(x, params)
    out = jax.block_until_ready(out)

    ref = reference_forward(x, w1_t, b1, w2_t, b2)
    assert out.shape == (B, output_size)
    # bf16 matmul operands + bf16 output storage -> loosened tolerance vs f32 ref.
    assert jnp.allclose(out, ref, atol=2e-2, rtol=0.0), (
        f"max abs err {jnp.max(jnp.abs(out - ref))}")
    # Padded classes contribute exactly 0; real-class probs sum to 1 (bf16 rounding).
    assert jnp.allclose(jnp.sum(out, axis=1), 1.0, atol=2e-2)

    print("KERNEL_OK")
</pallas_src>

<mosaic_0001>
module attributes {stable_mosaic.version = 11 : i64} {
  func.func @classify_kernel(%arg0: i32, %arg1: memref<16x384xf32, #tpu.memory_space<vmem>>, %arg2: memref<384x128xbf16, #tpu.memory_space<vmem>>, %arg3: memref<1x128xf32, #tpu.memory_space<vmem>>, %arg4: memref<128x128xbf16, #tpu.memory_space<vmem>>, %arg5: memref<1x128xf32, #tpu.memory_space<vmem>>, %arg6: memref<16x128xbf16, #tpu.memory_space<vmem>>) attributes {dimension_semantics = [#tpu.dimension_semantics<parallel>], iteration_bounds = array<i64: 1>, scalar_prefetch = 0 : i64, scratch_operands = 0 : i64, tpu.core_type = #tpu.core_type<tc>, window_params = [{transform_indices = @transform_0, window_bounds = array<i64: 16, 384>}, {pipeline_mode = #tpu.pipeline_mode<synchronous>, transform_indices = @transform_1, window_bounds = array<i64: 384, 128>}, {pipeline_mode = #tpu.pipeline_mode<synchronous>, transform_indices = @transform_2, window_bounds = array<i64: 1, 128>}, {pipeline_mode = #tpu.pipeline_mode<synchronous>, transform_indices = @transform_3, window_bounds = array<i64: 128, 128>}, {pipeline_mode = #tpu.pipeline_mode<synchronous>, transform_indices = @transform_4, window_bounds = array<i64: 1, 128>}, {transform_indices = @transform_5, window_bounds = array<i64: 16, 128>}]} {
    %c0 = arith.constant 0 : index
    %c0_0 = arith.constant 0 : index
    %0 = vector.load %arg1[%c0, %c0_0] : memref<16x384xf32, #tpu.memory_space<vmem>>, vector<16x384xf32>
    %1 = arith.truncf %0 : vector<16x384xf32> to vector<16x384xbf16>
    %c0_1 = arith.constant 0 : index
    %c0_2 = arith.constant 0 : index
    %2 = vector.load %arg2[%c0_1, %c0_2] : memref<384x128xbf16, #tpu.memory_space<vmem>>, vector<384x128xbf16>
    %cst = arith.constant dense<0.000000e+00> : vector<16x128xf32>
    %3 = tpu.matmul %1, %2, %cst {dimension_numbers = #tpu.dot_dimension_numbers<[1], [0], [0], [1], [0, 0, 1, 1], [], []>} : vector<16x384xbf16>, vector<384x128xbf16>, vector<16x128xf32> -> vector<16x128xf32>
    %c0_3 = arith.constant 0 : index
    %c0_4 = arith.constant 0 : index
    %4 = vector.load %arg3[%c0_3, %c0_4] : memref<1x128xf32, #tpu.memory_space<vmem>>, vector<1x128xf32>
    %5 = vector.broadcast %4 : vector<1x128xf32> to vector<16x128xf32>
    %6 = arith.addf %3, %5 : vector<16x128xf32>
    %cst_5 = arith.constant 0.000000e+00 : f32
    %7 = vector.broadcast %cst_5 : f32 to vector<16x128xf32>
    %8 = arith.maximumf %6, %7 : vector<16x128xf32>
    %9 = arith.truncf %8 : vector<16x128xf32> to vector<16x128xbf16>
    %c0_6 = arith.constant 0 : index
    %c0_7 = arith.constant 0 : index
    %10 = vector.load %arg4[%c0_6, %c0_7] : memref<128x128xbf16, #tpu.memory_space<vmem>>, vector<128x128xbf16>
    %cst_8 = arith.constant dense<0.000000e+00> : vector<16x128xf32>
    %11 = tpu.matmul %9, %10, %cst_8 {dimension_numbers = #tpu.dot_dimension_numbers<[1], [0], [0], [1], [0, 0, 1, 1], [], []>} : vector<16x128xbf16>, vector<128x128xbf16>, vector<16x128xf32> -> vector<16x128xf32>
    %c0_9 = arith.constant 0 : index
    %c0_10 = arith.constant 0 : index
    %12 = vector.load %arg5[%c0_9, %c0_10] : memref<1x128xf32, #tpu.memory_space<vmem>>, vector<1x128xf32>
    %13 = vector.broadcast %12 : vector<1x128xf32> to vector<16x128xf32>
    %14 = arith.addf %11, %13 : vector<16x128xf32>
    %cst_11 = arith.constant dense<0xFF800000> : vector<16xf32>
    %15 = vector.multi_reduction <maximumf>, %14, %cst_11 [1] : vector<16x128xf32> to vector<16xf32>
    %16 = vector.shape_cast %15 : vector<16xf32> to vector<16x1xf32>
    %17 = vector.broadcast %16 : vector<16x1xf32> to vector<16x128xf32>
    %18 = arith.subf %14, %17 : vector<16x128xf32>
    %19 = math.exp %18 : vector<16x128xf32>
    %cst_12 = arith.constant dense<0.000000e+00> : vector<16xf32>
    %20 = vector.multi_reduction <add>, %19, %cst_12 [1] : vector<16x128xf32> to vector<16xf32>
    %21 = vector.shape_cast %20 : vector<16xf32> to vector<16x1xf32>
    %22 = tpu.reciprocal %21 {approx = true} : vector<16x1xf32> -> vector<16x1xf32>
    %23 = vector.broadcast %22 : vector<16x1xf32> to vector<16x128xf32>
    %24 = arith.mulf %19, %23 : vector<16x128xf32>
    %25 = arith.truncf %24 : vector<16x128xf32> to vector<16x128xbf16>
    %c0_13 = arith.constant 0 : index
    %c0_14 = arith.constant 0 : index
    %26 = vector.load %arg6[%c0_13, %c0_14] : memref<16x128xbf16, #tpu.memory_space<vmem>>, vector<16x128xbf16>
    tpu.vector_store %arg6[%c0_13, %c0_14], %25 {strides = array<i32>} : memref<16x128xbf16, #tpu.memory_space<vmem>>, vector<16x128xbf16>,
    return
  }
  func.func @transform_0(%arg0: i32) -> (i32, i32) {
    %c0_i32 = arith.constant 0 : i32
    %c0_i32_0 = arith.constant 0 : i32
    return %arg0, %c0_i32 : i32, i32
  }
  func.func @transform_1(%arg0: i32) -> (i32, i32) {
    %c0_i32 = arith.constant 0 : i32
    %c0_i32_0 = arith.constant 0 : i32
    %c0_i32_1 = arith.constant 0 : i32
    return %c0_i32, %c0_i32_0 : i32, i32
  }
  func.func @transform_2(%arg0: i32) -> (i32, i32) {
    %c0_i32 = arith.constant 0 : i32
    %c0_i32_0 = arith.constant 0 : i32
    %c0_i32_1 = arith.constant 0 : i32
    return %c0_i32, %c0_i32_0 : i32, i32
  }
  func.func @transform_3(%arg0: i32) -> (i32, i32) {
    %c0_i32 = arith.constant 0 : i32
    %c0_i32_0 = arith.constant 0 : i32
    %c0_i32_1 = arith.constant 0 : i32
    return %c0_i32, %c0_i32_0 : i32, i32
  }
  func.func @transform_4(%arg0: i32) -> (i32, i32) {
    %c0_i32 = arith.constant 0 : i32
    %c0_i32_0 = arith.constant 0 : i32
    %c0_i32_1 = arith.constant 0 : i32
    return %c0_i32, %c0_i32_0 : i32, i32
  }
  func.func @transform_5(%arg0: i32) -> (i32, i32) {
    %c0_i32 = arith.constant 0 : i32
    %c0_i32_0 = arith.constant 0 : i32
    return %arg0, %c0_i32 : i32, i32
  }
}

</mosaic_0001>

<llo_original>
// kernel: tpu_custom_call.1
$region0: #{tpu_custom_call.1}
  #allocation0 [shape = 'u32[]', space=smem, size = 0x4, offset = 0x4, fixed_abs, tag = 'smem constant byte address 0x4 - core index']
  #allocation1 [shape = 'u32[144,128]{1,0:T(1,128)}', space=vmem, size = 0x12000, scoped, tag = 'internal scratch']
  %s0 = inlined_call_operand.hbm [shape: f32[2,384], index: 0, kind: input, shape index: {}]
  %s1 = inlined_call_operand.hbm [shape: bf16[384,128], index: 1, kind: input, shape index: {}]
  %s2 = inlined_call_operand.vmem [shape: f32[1,128], index: 2, kind: input, shape index: {}]
  %s3 = inlined_call_operand.hbm [shape: bf16[128,128], index: 3, kind: input, shape index: {}]
  %s4 = inlined_call_operand.vmem [shape: f32[1,128], index: 4, kind: input, shape index: {}]
  %s5 = inlined_call_operand.hbm [shape: bf16[2,128], index: 5, kind: output, shape index: {}]
  %s6 = sld [smem:[#allocation0]]
  $region42: #{tpu_custom_call.1} parent=0
    _
  %s8 = ssub.s32 1, %s6
  %s9 = scalar_select 0, %s8, %s6
  $region1: #{tpu_custom_call.1} parent=0
    #allocation2 [shape = 'u8[24576]{0}', space=vmem, size = 0x6000, scoped, tag = 'input window, operand 0, single buffered']
    #allocation3 [shape = 's32[1]{0}', space=sflag, size = 0x4, scoped, tag = 'scoped memory for tpu_custom_call.1']
    #allocation4 [shape = 's32[1]{0}', space=sflag, size = 0x4, scoped, tag = 'scoped memory for tpu_custom_call.1']
    #allocation5 [shape = 'u8[98304]{0}', space=vmem, size = 0x18000, scoped, tag = 'input window, operand 1, single buffered']
    #allocation6 [shape = 's32[1]{0}', space=sflag, size = 0x4, scoped, tag = 'scoped memory for tpu_custom_call.1']
    #allocation7 [shape = 'u8[32768]{0}', space=vmem, size = 0x8000, scoped, tag = 'input window, operand 3, single buffered']
    #allocation8 [shape = 'u8[4096]{0}', space=vmem, size = 0x1000, scoped, tag = 'output window, operand 0, single buffered']
    %10 = vsyncpa [#allocation3], 0
    %11 = vsyncpa [#allocation6], 0
    %12 = vsyncpa [#allocation4], 0
    // Predicated region
    $region2: #{tpu_custom_call.1} parent=1 // pred_check
      _
    $region3: #{tpu_custom_call.1} parent=1 // pred_check_branch
      %14 = sbr.rel (0) target = $region5
    $region4: #{tpu_custom_call.1} parent=1 // pred_region
      %s16 = ssub.s32 768, 96
      %17 = vsyncadd [#allocation3], %s16
      %s18 = sshll.u32 [#allocation2], 4
      %s19 = int_to_ptr.vmem [resolvable:$true] %s18
      %24 = dma.hbm_to_vmem [thread:$0]  %s0, 96, %s19, [#allocation3], 96, 96, 6
    $region5: #{tpu_custom_call.1} parent=1 // pred_fallthru
      _
    // Predicated region
    $region6: #{tpu_custom_call.1} parent=1 // pred_check
      _
    $region7: #{tpu_custom_call.1} parent=1 // pred_check_branch
      %26 = sbr.rel (0) target = $region9
    $region8: #{tpu_custom_call.1} parent=1 // pred_region
      %s28 = ssub.s32 3072, 3072
      %29 = vsyncadd [#allocation6], %s28
      %s30 = sshll.u32 [#allocation5], 4
      %s31 = int_to_ptr.vmem [resolvable:$true] %s30
      %36 = dma.hbm_to_vmem [thread:$0]  %s1, 3072, %s31, [#allocation6], 64, 64, 4
    $region9: #{tpu_custom_call.1} parent=1 // pred_fallthru
      _
    // Predicated region
    $region10: #{tpu_custom_call.1} parent=1 // pred_check
      _
    $region11: #{tpu_custom_call.1} parent=1 // pred_check_branch
      %38 = sbr.rel (0) target = $region13
    $region12: #{tpu_custom_call.1} parent=1 // pred_region
      _
    $region13: #{tpu_custom_call.1} parent=1 // pred_fallthru
      _
    // Predicated region
    $region14: #{tpu_custom_call.1} parent=1 // pred_check
      _
    $region15: #{tpu_custom_call.1} parent=1 // pred_check_branch
      %40 = sbr.rel (0) target = $region17
    $region16: #{tpu_custom_call.1} parent=1 // pred_region
      %s42 = ssub.s32 1024, 1024
      %43 = vsyncadd [#allocation6], %s42
      %s44 = sshll.u32 [#allocation7], 4
      %s45 = int_to_ptr.vmem [resolvable:$true] %s44
      %50 = dma.hbm_to_vmem [thread:$0]  %s3, 1024, %s45, [#allocation6], 64, 64, 4
    $region17: #{tpu_custom_call.1} parent=1 // pred_fallthru
      _
    // Predicated region
    $region18: #{tpu_custom_call.1} parent=1 // pred_check
      _
    $region19: #{tpu_custom_call.1} parent=1 // pred_check_branch
      %52 = sbr.rel (0) target = $region21
    $region20: #{tpu_custom_call.1} parent=1 // pred_region
      _
    $region21: #{tpu_custom_call.1} parent=1 // pred_fallthru
      _
    // Predicated region
    $region22: #{tpu_custom_call.1} parent=1 // pred_check
      _
    $region23: #{tpu_custom_call.1} parent=1 // pred_check_branch
      %54 = sbr.rel (0) target = $region25
    $region24: #{tpu_custom_call.1} parent=1 // pred_region
      %55 = dma.done [#allocation3], 768
    $region25: #{tpu_custom_call.1} parent=1 // pred_fallthru
      _
    // Predicated region
    $region26: #{tpu_custom_call.1} parent=1 // pred_check
      _
    $region27: #{tpu_custom_call.1} parent=1 // pred_check_branch
      %57 = sbr.rel (0) target = $region29
    $region28: #{tpu_custom_call.1} parent=1 // pred_region
      %58 = dma.done [#allocation6], 3072
    $region29: #{tpu_custom_call.1} parent=1 // pred_fallthru
      _
    // Predicated region
    $region30: #{tpu_custom_call.1} parent=1 // pred_check
      _
    $region31: #{tpu_custom_call.1} parent=1 // pred_check_branch
      %60 = sbr.rel (0) target = $region33
    $region32: #{tpu_custom_call.1} parent=1 // pred_region
      %61 = dma.done [#allocation6], 1024
    $region33: #{tpu_custom_call.1} parent=1 // pred_fallthru
      _
    %v63 = vld [vmem:[#allocation2] sm:$0x3f]
    %v64 = vld [vmem:[#allocation2 + $0x6] sm:$0x3f]
    %v65 = vld [vmem:[#allocation2 + $0xc] sm:$0x3f]
    %v66 = vld [vmem:[#allocation2 + $0x12] sm:$0x3f]
    %v67 = vld [vmem:[#allocation2 + $0x18] sm:$0x3f]
    %v68 = vld [vmem:[#allocation2 + $0x1e] sm:$0x3f]
    %v69 = vld [vmem:[#allocation2 + $0x24] sm:$0x3f]
    %v70 = vld [vmem:[#allocation2 + $0x2a] sm:$0x3f]
    %v79 = vcombine.low %v63, %v64
    %v80 = vcombine.high %v63, %v64
    %v81 = vcombine.low %v65, %v66
    %v82 = vcombine.high %v65, %v66
    %v84 = vunpack.c.l.s4 1983009808
    %v85 = vunpack.c.0.s8 %v84
    %v86 = vlaneseq
    %v87 = vshrl.u32 %v86, 7
    %v88 = vsub.s32 %v85, %v87
    %v89 = vrot.slane %v79, %v88
    %v91 = vunpack.c.l.s4 1983009808
    %v92 = vunpack.c.0.s8 %v91
    %v93 = vlaneseq
    %v94 = vshrl.u32 %v93, 7
    %v95 = vsub.s32 %v92, %v94
    %v96 = vrot.slane %v80, %v95
    %v98 = vunpack.c.l.s4 1983009808
    %v99 = vunpack.c.0.s8 %v98
    %v100 = vlaneseq
    %v101 = vshrl.u32 %v100, 7
    %v102 = vsub.s32 %v99, %v101
    %v103 = vrot.slane %v81, %v102
    %v105 = vunpack.c.l.s4 1983009808
    %v106 = vunpack.c.0.s8 %v105
    %v107 = vlaneseq
    %v108 = vshrl.u32 %v107, 7
    %v109 = vsub.s32 %v106, %v108
    %v110 = vrot.slane %v82, %v109
    %v111 = vcombine.low %v89, %v103
    %v112 = vcombine.high %v89, %v103
    %v113 = vcombine.low %v96, %v110
    %v114 = vcombine.low %v67, %v68
    %v115 = vcombine.high %v67, %v68
    %v116 = vcombine.low %v69, %v70
    %v117 = vcombine.high %v69, %v70
    %v119 = vunpack.c.l.s4 1983009808
    %v120 = vunpack.c.0.s8 %v119
    %v121 = vlaneseq
    %v122 = vshrl.u32 %v121, 7
    %v123 = vsub.s32 %v120, %v122
    %v124 = vrot.slane %v114, %v123
    %v126 = vunpack.c.l.s4 1983009808
    %v127 = vunpack.c.0.s8 %v126
    %v128 = vlaneseq
    %v129 = vshrl.u32 %v128, 7
    %v130 = vsub.s32 %v127, %v129
    %v131 = vrot.slane %v115, %v130
    %v133 = vunpack.c.l.s4 1983009808
    %v134 = vunpack.c.0.s8 %v133
    %v135 = vlaneseq
    %v136 = vshrl.u32 %v135, 7
    %v137 = vsub.s32 %v134, %v136
    %v138 = vrot.slane %v116, %v137
    %v140 = vunpack.c.l.s4 1983009808
    %v141 = vunpack.c.0.s8 %v140
    %v142 = vlaneseq
    %v143 = vshrl.u32 %v142, 7
    %v144 = vsub.s32 %v141, %v143
    %v145 = vrot.slane %v117, %v144
    %v146 = vcombine.low %v124, %v138
    %v147 = vcombine.high %v124, %v138
    %v148 = vcombine.low %v131, %v145
    %v155 = vpack.c.bf16 %v146, %v111
    %v156 = vpack.c.bf16 %v147, %v112
    %v157 = vpack.c.bf16 %v148, %v113
    %v158 = vld [vmem:[#allocation5] sm:$0xf]
    %v159 = vld [vmem:[#allocation5 + $0x4] sm:$0xf]
    %v160 = vld [vmem:[#allocation5 + $0x8] sm:$0xf]
    %v161 = vld [vmem:[#allocation5 + $0xc] sm:$0xf]
    %v162 = vld [vmem:[#allocation5 + $0x10] sm:$0xf]
    %v163 = vld [vmem:[#allocation5 + $0x14] sm:$0xf]
    %v164 = vld [vmem:[#allocation5 + $0x18] sm:$0xf]
    %v165 = vld [vmem:[#allocation5 + $0x1c] sm:$0xf]
    %v166 = vld [vmem:[#allocation5 + $0x20] sm:$0xf]
    %v167 = vld [vmem:[#allocation5 + $0x24] sm:$0xf]
    %v168 = vld [vmem:[#allocation5 + $0x28] sm:$0xf]
    %v169 = vld [vmem:[#allocation5 + $0x2c] sm:$0xf]
    %v170 = vld [vmem:[#allocation5 + $0x30] sm:$0xf]
    %v171 = vld [vmem:[#allocation5 + $0x34] sm:$0xf]
    %v172 = vld [vmem:[#allocation5 + $0x38] sm:$0xf]
    %v173 = vld [vmem:[#allocation5 + $0x3c] sm:$0xf]
    %v174 = vld [vmem:[#allocation5 + $0x40] sm:$0xf]
    %v175 = vld [vmem:[#allocation5 + $0x44] sm:$0xf]
    %v176 = vld [vmem:[#allocation5 + $0x48] sm:$0xf]
    %v177 = vld [vmem:[#allocation5 + $0x4c] sm:$0xf]
    %v178 = vld [vmem:[#allocation5 + $0x50] sm:$0xf]
    %v179 = vld [vmem:[#allocation5 + $0x54] sm:$0xf]
    %v180 = vld [vmem:[#allocation5 + $0x58] sm:$0xf]
    %v181 = vld [vmem:[#allocation5 + $0x5c] sm:$0xf]
    %v182 = vld [vmem:[#allocation5 + $0x60] sm:$0xf]
    %v183 = vld [vmem:[#allocation5 + $0x64] sm:$0xf]
    %v184 = vld [vmem:[#allocation5 + $0x68] sm:$0xf]
    %v185 = vld [vmem:[#allocation5 + $0x6c] sm:$0xf]
    %v186 = vld [vmem:[#allocation5 + $0x70] sm:$0xf]
    %v187 = vld [vmem:[#allocation5 + $0x74] sm:$0xf]
    %v188 = vld [vmem:[#allocation5 + $0x78] sm:$0xf]
    %v189 = vld [vmem:[#allocation5 + $0x7c] sm:$0xf]
    %v190 = vld [vmem:[#allocation5 + $0x80] sm:$0xf]
    %v191 = vld [vmem:[#allocation5 + $0x84] sm:$0xf]
    %v192 = vld [vmem:[#allocation5 + $0x88] sm:$0xf]
    %v193 = vld [vmem:[#allocation5 + $0x8c] sm:$0xf]
    %v194 = vld [vmem:[#allocation5 + $0x90] sm:$0xf]
    %v195 = vld [vmem:[#allocation5 + $0x94] sm:$0xf]
    %v196 = vld [vmem:[#allocation5 + $0x98] sm:$0xf]
    %v197 = vld [vmem:[#allocation5 + $0x9c] sm:$0xf]
    %v198 = vld [vmem:[#allocation5 + $0xa0] sm:$0xf]
    %v199 = vld [vmem:[#allocation5 + $0xa4] sm:$0xf]
    %v200 = vld [vmem:[#allocation5 + $0xa8] sm:$0xf]
    %v201 = vld [vmem:[#allocation5 + $0xac] sm:$0xf]
    %v202 = vld [vmem:[#allocation5 + $0xb0] sm:$0xf]
    %v203 = vld [vmem:[#allocation5 + $0xb4] sm:$0xf]
    %v204 = vld [vmem:[#allocation5 + $0xb8] sm:$0xf]
    %v205 = vld [vmem:[#allocation5 + $0xbc] sm:$0xf]
    %v206 = vld [vmem:[%s2] sm:$0x1]
    %v208 = vlaneseq
    %v209 = vshrl.u32 %v208, 7
    %v210 = vsub.s32 0, %v209
    %v211 = vrot.slane %v206, %v210
    %v261 = vunpack.c.l.b16 %v158
    %v262 = vunpack.c.l.b16 %v159
    %v263 = vunpack.c.l.b16 %v160
    %v264 = vunpack.c.l.b16 %v161
    %v265 = vunpack.c.l.b16 %v162
    %v266 = vunpack.c.l.b16 %v163
    %v267 = vunpack.c.l.b16 %v164
    %v268 = vunpack.c.l.b16 %v165
    %v269 = vunpack.c.l.b16 %v166
    %v270 = vunpack.c.l.b16 %v167
    %v271 = vunpack.c.l.b16 %v168
    %v272 = vunpack.c.l.b16 %v169
    %v273 = vunpack.c.l.b16 %v170
    %v274 = vunpack.c.l.b16 %v171
    %v275 = vunpack.c.l.b16 %v172
    %v276 = vunpack.c.l.b16 %v173
    %v277 = vunpack.c.l.b16 %v174
    %v278 = vunpack.c.l.b16 %v175
    %v279 = vunpack.c.l.b16 %v176
    %v280 = vunpack.c.l.b16 %v177
    %v281 = vunpack.c.l.b16 %v178
    %v282 = vunpack.c.l.b16 %v179
    %v283 = vunpack.c.l.b16 %v180
    %v284 = vunpack.c.l.b16 %v181
    %v285 = vunpack.c.l.b16 %v182
    %v286 = vunpack.c.l.b16 %v183
    %v287 = vunpack.c.l.b16 %v184
    %v288 = vunpack.c.l.b16 %v185
    %v289 = vunpack.c.l.b16 %v186
    %v290 = vunpack.c.l.b16 %v187
    %v291 = vunpack.c.l.b16 %v188
    %v292 = vunpack.c.l.b16 %v189
    %v293 = vunpack.c.l.b16 %v190
    %v294 = vunpack.c.l.b16 %v191
    %v295 = vunpack.c.l.b16 %v192
    %v296 = vunpack.c.l.b16 %v193
    %v297 = vunpack.c.l.b16 %v194
    %v298 = vunpack.c.l.b16 %v195
    %v299 = vunpack.c.l.b16 %v196
    %v300 = vunpack.c.l.b16 %v197
    %v301 = vunpack.c.l.b16 %v198
    %v302 = vunpack.c.l.b16 %v199
    %v303 = vunpack.c.l.b16 %v200
    %v304 = vunpack.c.l.b16 %v201
    %v305 = vunpack.c.l.b16 %v202
    %v306 = vunpack.c.l.b16 %v203
    %v307 = vunpack.c.l.b16 %v204
    %v308 = vunpack.c.l.b16 %v205
    %v309 = vpack.c.b16 %v262, %v261
    %v310 = vpack.c.b16 %v264, %v263
    %v311 = vpack.c.b16 %v266, %v265
    %v312 = vpack.c.b16 %v268, %v267
    %v313 = vpack.c.b16 %v270, %v269
    %v314 = vpack.c.b16 %v272, %v271
    %v315 = vpack.c.b16 %v274, %v273
    %v316 = vpack.c.b16 %v276, %v275
    %v317 = vpack.c.b16 %v278, %v277
    %v318 = vpack.c.b16 %v280, %v279
    %v319 = vpack.c.b16 %v282, %v281
    %v320 = vpack.c.b16 %v284, %v283
    %v321 = vpack.c.b16 %v286, %v285
    %v322 = vpack.c.b16 %v288, %v287
    %v323 = vpack.c.b16 %v290, %v289
    %v324 = vpack.c.b16 %v292, %v291
    %v325 = vpack.c.b16 %v294, %v293
    %v326 = vpack.c.b16 %v296, %v295
    %v327 = vpack.c.b16 %v298, %v297
    %v328 = vpack.c.b16 %v300, %v299
    %v329 = vpack.c.b16 %v302, %v301
    %v330 = vpack.c.b16 %v304, %v303
    %v331 = vpack.c.b16 %v306, %v305
    %v332 = vpack.c.b16 %v308, %v307
    %357 = vmatprep.subr.bf16.mxu0 0
    %358 = vmatpush1.bf16.msra.mxu0 %v316
    %359 = vmatprep.subr.bf16.mxu0 0
    %360 = vmatpush1.bf16.msra.mxu0 %v315
    %361 = vmatprep.subr.bf16.mxu0 0
    %362 = vmatpush1.bf16.msra.mxu0 %v314
    %363 = vmatprep.subr.bf16.mxu0 0
    %364 = vmatpush1.bf16.msra.mxu0 %v313
    %365 = vmatprep.subr.bf16.mxu0 0
    %366 = vmatpush1.bf16.msra.mxu0 %v312
    %367 = vmatprep.subr.bf16.mxu0 0
    %368 = vmatpush1.bf16.msra.mxu0 %v311
    %369 = vmatprep.subr.bf16.mxu0 0
    %370 = vmatpush1.bf16.msra.mxu0 %v310
    %371 = vmatprep.subr.bf16.mxu0 0
    %372 = vmatpush1.bf16.msra.mxu0 %v309
    %373 = vmatprep.subr.bf16.mxu0 0
    %374 = vmatpush2.bf16.msra.mxu0 %v324
    %375 = vmatprep.subr.bf16.mxu0 0
    %376 = vmatpush2.bf16.msra.mxu0 %v323
    %377 = vmatprep.subr.bf16.mxu0 0
    %378 = vmatpush2.bf16.msra.mxu0 %v322
    %379 = vmatprep.subr.bf16.mxu0 0
    %380 = vmatpush2.bf16.msra.mxu0 %v321
    %381 = vmatprep.subr.bf16.mxu0 0
    %382 = vmatpush2.bf16.msra.mxu0 %v320
    %383 = vmatprep.subr.bf16.mxu0 0
    %384 = vmatpush2.bf16.msra.mxu0 %v319
    %385 = vmatprep.subr.bf16.mxu0 0
    %386 = vmatpush2.bf16.msra.mxu0 %v318
    %387 = vmatprep.subr.bf16.mxu0 0
    %388 = vmatpush2.bf16.msra.mxu0 %v317
    %389 = vmatprep.mubr.bf16.mxu0 %v156
    %390 = vmatmul.mubr.bf16.gmra.mxu0 %v155
    %v391 = vpop.f32.mrf.mxu0
    %v392 = vadd.f32 %v211, %v391
    %v393 = vpop.f32.mrf.mxu0
    %v394 = vpop.f32.mrf.mxu0
    %v395 = vadd.f32 %v211, %v394
    %v396 = vpop.f32.mrf.mxu0
    %397 = vdwg.mxu0
    %398 = vmatprep.subr.bf16.mxu0 0
    %399 = vmatpush1.bf16.msra.mxu0 %v332
    %400 = vmatprep.subr.bf16.mxu0 0
    %401 = vmatpush1.bf16.msra.mxu0 %v331
    %402 = vmatprep.subr.bf16.mxu0 0
    %403 = vmatpush1.bf16.msra.mxu0 %v330
    %404 = vmatprep.subr.bf16.mxu0 0
    %405 = vmatpush1.bf16.msra.mxu0 %v329
    %406 = vmatprep.subr.bf16.mxu0 0
    %407 = vmatpush1.bf16.msra.mxu0 %v328
    %408 = vmatprep.subr.bf16.mxu0 0
    %409 = vmatpush1.bf16.msra.mxu0 %v327
    %410 = vmatprep.subr.bf16.mxu0 0
    %411 = vmatpush1.bf16.msra.mxu0 %v326
    %412 = vmatprep.subr.bf16.mxu0 0
    %413 = vmatpush1.bf16.msra.mxu0 %v325
    %414 = vmatprep.subr.bf16.mxu0 0
    %415 = vmatpush2.bf16.msra.mxu0 0
    %416 = vmatprep.subr.bf16.mxu0 0
    %417 = vmatpush2.bf16.msra.mxu0 0
    %418 = vmatprep.subr.bf16.mxu0 0
    %419 = vmatpush2.bf16.msra.mxu0 0
    %420 = vmatprep.subr.bf16.mxu0 0
    %421 = vmatpush2.bf16.msra.mxu0 0
    %422 = vmatprep.subr.bf16.mxu0 0
    %423 = vmatpush2.bf16.msra.mxu0 0
    %424 = vmatprep.subr.bf16.mxu0 0
    %425 = vmatpush2.bf16.msra.mxu0 0
    %426 = vmatprep.subr.bf16.mxu0 0
    %427 = vmatpush2.bf16.msra.mxu0 0
    %428 = vmatprep.subr.bf16.mxu0 0
    %429 = vmatpush2.bf16.msra.mxu0 0
    %430 = vmatprep.mubr.bf16.mxu0 0
    %431 = vmatmul.mubr.bf16.gmra.mxu0 %v157
    %v432 = vpop.f32.mrf.mxu0
    %v433 = vadd.f32 %v392, %v432
    %v434 = vpop.f32.mrf.mxu0
    %v435 = vpop.f32.mrf.mxu0
    %v436 = vadd.f32 %v395, %v435
    %v437 = vpop.f32.mrf.mxu0
    %438 = vdwg.mxu0
    %v439 = vmax.f32 %v433, 0.0
    %v440 = vmax.f32 %v436, 0.0
    %v441 = vpack.c.bf16 %v440, %v439
    %v442 = vld [vmem:[#allocation7] sm:$0xf]
    %v443 = vld [vmem:[#allocation7 + $0x4] sm:$0xf]
    %v444 = vld [vmem:[#allocation7 + $0x8] sm:$0xf]
    %v445 = vld [vmem:[#allocation7 + $0xc] sm:$0xf]
    %v446 = vld [vmem:[#allocation7 + $0x10] sm:$0xf]
    %v447 = vld [vmem:[#allocation7 + $0x14] sm:$0xf]
    %v448 = vld [vmem:[#allocation7 + $0x18] sm:$0xf]
    %v449 = vld [vmem:[#allocation7 + $0x1c] sm:$0xf]
    %v450 = vld [vmem:[#allocation7 + $0x20] sm:$0xf]
    %v451 = vld [vmem:[#allocation7 + $0x24] sm:$0xf]
    %v452 = vld [vmem:[#allocation7 + $0x28] sm:$0xf]
    %v453 = vld [vmem:[#allocation7 + $0x2c] sm:$0xf]
    %v454 = vld [vmem:[#allocation7 + $0x30] sm:$0xf]
    %v455 = vld [vmem:[#allocation7 + $0x34] sm:$0xf]
    %v456 = vld [vmem:[#allocation7 + $0x38] sm:$0xf]
    %v457 = vld [vmem:[#allocation7 + $0x3c] sm:$0xf]
    %v458 = vld [vmem:[%s4] sm:$0x1]
    %v460 = vlaneseq
    %v461 = vshrl.u32 %v460, 7
    %v462 = vsub.s32 0, %v461
    %v463 = vrot.slane %v458, %v462
    %v481 = vunpack.c.l.b16 %v442
    %v482 = vunpack.c.l.b16 %v443
    %v483 = vunpack.c.l.b16 %v444
    %v484 = vunpack.c.l.b16 %v445
    %v485 = vunpack.c.l.b16 %v446
    %v486 = vunpack.c.l.b16 %v447
    %v487 = vunpack.c.l.b16 %v448
    %v488 = vunpack.c.l.b16 %v449
    %v489 = vunpack.c.l.b16 %v450
    %v490 = vunpack.c.l.b16 %v451
    %v491 = vunpack.c.l.b16 %v452
    %v492 = vunpack.c.l.b16 %v453
    %v493 = vunpack.c.l.b16 %v454
    %v494 = vunpack.c.l.b16 %v455
    %v495 = vunpack.c.l.b16 %v456
    %v496 = vunpack.c.l.b16 %v457
    %v497 = vpack.c.b16 %v482, %v481
    %v498 = vpack.c.b16 %v484, %v483
    %v499 = vpack.c.b16 %v486, %v485
    %v500 = vpack.c.b16 %v488, %v487
    %v501 = vpack.c.b16 %v490, %v489
    %v502 = vpack.c.b16 %v492, %v491
    %v503 = vpack.c.b16 %v494, %v493
    %v504 = vpack.c.b16 %v496, %v495
    %513 = vmatprep.subr.bf16.mxu0 0
    %514 = vmatpush1.bf16.msra.mxu0 %v504
    %515 = vmatprep.subr.bf16.mxu0 0
    %516 = vmatpush1.bf16.msra.mxu0 %v503
    %517 = vmatprep.subr.bf16.mxu0 0
    %518 = vmatpush1.bf16.msra.mxu0 %v502
    %519 = vmatprep.subr.bf16.mxu0 0
    %520 = vmatpush1.bf16.msra.mxu0 %v501
    %521 = vmatprep.subr.bf16.mxu0 0
    %522 = vmatpush1.bf16.msra.mxu0 %v500
    %523 = vmatprep.subr.bf16.mxu0 0
    %524 = vmatpush1.bf16.msra.mxu0 %v499
    %525 = vmatprep.subr.bf16.mxu0 0
    %526 = vmatpush1.bf16.msra.mxu0 %v498
    %527 = vmatprep.subr.bf16.mxu0 0
    %528 = vmatpush1.bf16.msra.mxu0 %v497
    %529 = vmatprep.subr.bf16.mxu0 0
    %530 = vmatpush2.bf16.msra.mxu0 0
    %531 = vmatprep.subr.bf16.mxu0 0
    %532 = vmatpush2.bf16.msra.mxu0 0
    %533 = vmatprep.subr.bf16.mxu0 0
    %534 = vmatpush2.bf16.msra.mxu0 0
    %535 = vmatprep.subr.bf16.mxu0 0
    %536 = vmatpush2.bf16.msra.mxu0 0
    %537 = vmatprep.subr.bf16.mxu0 0
    %538 = vmatpush2.bf16.msra.mxu0 0
    %539 = vmatprep.subr.bf16.mxu0 0
    %540 = vmatpush2.bf16.msra.mxu0 0
    %541 = vmatprep.subr.bf16.mxu0 0
    %542 = vmatpush2.bf16.msra.mxu0 0
    %543 = vmatprep.subr.bf16.mxu0 0
    %544 = vmatpush2.bf16.msra.mxu0 0
    %545 = vmatprep.mubr.bf16.mxu0 0
    %546 = vmatmul.mubr.bf16.gmra.mxu0 %v441
    %v547 = vpop.f32.mrf.mxu0
    %v548 = vadd.f32 %v463, %v547
    %v549 = vpop.f32.mrf.mxu0
    %v550 = vpop.f32.mrf.mxu0
    %v551 = vadd.f32 %v463, %v550
    %v552 = vpop.f32.mrf.mxu0
    %553 = vdwg.mxu0
    %554 = vmax.xlane.f32.xlu0 %v548
    %v555 = vpop.xlane.xlu0 %554
    %556 = vmax.xlane.f32.xlu0 %v551
    %v557 = vpop.xlane.xlu0 %556
    %v558 = vsub.f32 %v548, %v555
    %v559 = vsub.f32 %v551, %v557
    %v560 = vmul.f32 %v558, 1.442695
    %v561 = vpow.pop %v560
    %v562 = vmul.f32 %v559, 1.442695
    %v563 = vpow.pop %v562
    %564 = vadd.xlane.f32.xlu0 %v561
    %v565 = vpop.xlane.xlu0 %564
    %566 = vadd.xlane.f32.xlu0 %v563
    %v567 = vpop.xlane.xlu0 %566
    %v568 = vrcp.pop %v565
    %v569 = vrcp.pop %v567
    %v570 = vmul.f32 %v561, %v568
    %v571 = vmul.f32 %v563, %v569
    %v572 = vpack.c.bf16 %v571, %v570
    %v574 = vcombine.high %v572, %v572
    %v576 = vunpack.c.l.s4 1966171168
    %v577 = vunpack.c.0.s8 %v576
    %v578 = vlaneseq
    %v579 = vshrl.u32 %v578, 7
    %v580 = vsub.s32 %v577, %v579
    %v581 = vrot.slane %v572, %v580
    %v583 = vunpack.c.l.s4 1966171168
    %v584 = vunpack.c.0.s8 %v583
    %v585 = vlaneseq
    %v586 = vshrl.u32 %v585, 7
    %v587 = vsub.s32 %v584, %v586
    %v588 = vrot.slane %v574, %v587
    %v589 = vcombine.high %v581, %v581
    %v590 = vcombine.high %v588, %v588
    %v592 = vunpack.c.l.s4 1966171168
    %v593 = vunpack.c.0.s8 %v592
    %v594 = vlaneseq
    %v595 = vshrl.u32 %v594, 7
    %v596 = vsub.s32 %v593, %v595
    %v597 = vrot.slane %v581, %v596
    %v599 = vunpack.c.l.s4 1966171168
    %v600 = vunpack.c.0.s8 %v599
    %v601 = vlaneseq
    %v602 = vshrl.u32 %v601, 7
    %v603 = vsub.s32 %v600, %v602
    %v604 = vrot.slane %v588, %v603
    %v606 = vunpack.c.l.s4 1966171168
    %v607 = vunpack.c.0.s8 %v606
    %v608 = vlaneseq
    %v609 = vshrl.u32 %v608, 7
    %v610 = vsub.s32 %v607, %v609
    %v611 = vrot.slane %v589, %v610
    %v613 = vunpack.c.l.s4 1966171168
    %v614 = vunpack.c.0.s8 %v613
    %v615 = vlaneseq
    %v616 = vshrl.u32 %v615, 7
    %v617 = vsub.s32 %v614, %v616
    %v618 = vrot.slane %v590, %v617
    %v619 = vcombine.high %v597, %v597
    %v620 = vcombine.high %v604, %v604
    %v621 = vcombine.high %v611, %v611
    %v622 = vcombine.high %v618, %v618
    %631 = vst [vmem:[#allocation8] sm:$0x1] %v597
    %632 = vst [vmem:[#allocation8 + $0x1] sm:$0x1] %v611
    %633 = vst [vmem:[#allocation8 + $0x2] sm:$0x1] %v619
    %634 = vst [vmem:[#allocation8 + $0x3] sm:$0x1] %v621
    %635 = vst [vmem:[#allocation8 + $0x4] sm:$0x1] %v604
    %636 = vst [vmem:[#allocation8 + $0x5] sm:$0x1] %v618
    %637 = vst [vmem:[#allocation8 + $0x6] sm:$0x1] %v620
    %638 = vst [vmem:[#allocation8 + $0x7] sm:$0x1] %v622
    // Predicated region
    $region34: #{tpu_custom_call.1} parent=1 // pred_check
      _
    $region35: #{tpu_custom_call.1} parent=1 // pred_check_branch
      %640 = sbr.rel (0) target = $region37
    $region36: #{tpu_custom_call.1} parent=1 // pred_region
      %s642 = ssub.s32 128, 16
      %643 = vsyncadd [#allocation4], %s642
      %s644 = sshll.u32 [#allocation8], 4
      %s645 = int_to_ptr.vmem [resolvable:$true] %s644
      %650 = dma.vmem_to_hbm [thread:$0]  %s645, 16, %s5, [#allocation4], 16, 16, 1
    $region37: #{tpu_custom_call.1} parent=1 // pred_fallthru
      _
    // Predicated region
    $region38: #{tpu_custom_call.1} parent=1 // pred_check
      _
    $region39: #{tpu_custom_call.1} parent=1 // pred_check_branch
      %652 = sbr.rel (0) target = $region41
    $region40: #{tpu_custom_call.1} parent=1 // pred_region
      %653 = dma.done [#allocation4], 128
    $region41: #{tpu_custom_call.1} parent=1 // pred_fallthru
      _
    %654 = vsyncpa [#allocation3], 1
    %655 = vsyncpa [#allocation6], 1
    %656 = vsyncpa [#allocation4], 1

</llo_original>
